<compile_context>
chip_gen: v7x
topology: tpu7x:2x2x1
jax: 0.10.0
libtpu: 0.0.40
codegen_flags: <defaults>
</compile_context>

<pallas_src>
import functools

import jax
import jax.numpy as jnp
from jax.experimental import pallas as pl
from jax.experimental.pallas import tpu as pltpu


def ffn_kernel(x_ref, w1_ref, b1_ref, w2_ref, b2_ref, o_ref):
    # x_ref : (1, C, TM) tile  -- channels on sublanes, voxels on lanes
    # w1_ref: (hid, C)   BN1 scale already folded in
    # b1_ref: (hid, 1)   BN1 shift
    # w2_ref: (C, hid)   BN2 scale already folded in
    # b2_ref: (C, 1)     BN2 shift
    x = x_ref[0]                                                 # (C, TM)
    # pw1 (pointwise conv == matmul over channels) + BN1 shift + ReLU
    h = jnp.dot(w1_ref[...], x, preferred_element_type=jnp.float32)
    h = jnp.maximum(h + b1_ref[...], 0.0)                        # (hid, TM)
    # pw2 + BN2 shift
    y = jnp.dot(w2_ref[...], h.astype(w2_ref.dtype),
                preferred_element_type=jnp.float32)              # (C, TM)
    o_ref[0] = (y + b2_ref[...]).astype(o_ref.dtype)


@functools.partial(jax.jit, static_argnames=("tm", "use_bf16"))
def ffn_pallas(x, params, tm=512, use_bf16=False):
    """x: (N, C, D, H, W) float32 (PyTorch NCDHW). Returns the same shape.

    params = (w1f, b1f, w2f, b2f) with BN scales folded into the weights:
      w1f: (hid, C), b1f: (hid, 1), w2f: (C, hid), b2f: (C, 1)
    """
    w1, b1, w2, b2 = params
    N, C, D, H, W = x.shape
    hid = w1.shape[0]
    S = D * H * W

    # Channels-first kept: this reshape is free (no data movement).
    x3 = x.reshape(N, C, S)
    if use_bf16:  # v6e/v7x: halve HBM/VMEM traffic, keep f32 accumulation.
        x3 = x3.astype(jnp.bfloat16)
        w1 = w1.astype(jnp.bfloat16)
        w2 = w2.astype(jnp.bfloat16)

    # Spatial tile: biggest that makes sense, multiple of 128 (or full S).
    tm = min(tm, S)
    if tm != S:
        tm = max(128, (tm // 128) * 128)
    grid = (N, pl.cdiv(S, tm))                 # no jnp.pad; Pallas masks tail

    # VMEM budget (double-buffered activations + weights + live f32 temps).
    a_it = x3.dtype.itemsize
    w_it = w1.dtype.itemsize
    vmem_est = (2 * C * tm * a_it                      # input tile
                + 2 * C * tm * x.dtype.itemsize        # output tile
                + 2 * (hid * C + C * hid) * w_it       # weights
                + 2 * (hid + C) * 4                    # biases
                + (hid + C) * tm * 4)                  # live intermediates
    vmem_limit = int(min(64 * 1024 * 1024,             # v7x VMEM is 64 MiB/TC
                         max(32 * 1024 * 1024, 2 * vmem_est)))

    flops = 4 * N * S * C * hid                        # two matmuls per voxel
    bytes_accessed = (x3.size * a_it + N * C * S * x.dtype.itemsize
                      + (w1.size + w2.size) * w_it
                      + (b1.size + b2.size) * 4)

    const = lambda n, s: (0, 0)
    out = pl.pallas_call(
        ffn_kernel,
        out_shape=jax.ShapeDtypeStruct((N, C, S), x.dtype),
        grid_spec=pltpu.PrefetchScalarGridSpec(
            num_scalar_prefetch=0,
            grid=grid,
            in_specs=[
                pl.BlockSpec((1, C, tm), lambda n, s: (n, 0, s)),  # x tile
                pl.BlockSpec((hid, C), const),                     # w1 (fused)
                pl.BlockSpec((hid, 1), const),                     # b1
                pl.BlockSpec((C, hid), const),                     # w2 (fused)
                pl.BlockSpec((C, 1), const),                       # b2
            ],
            out_specs=pl.BlockSpec((1, C, tm), lambda n, s: (n, 0, s)),
        ),
        compiler_params=pltpu.CompilerParams(
            dimension_semantics=("parallel", "parallel"),
            vmem_limit_bytes=vmem_limit),
        cost_estimate=pl.CostEstimate(
            flops=flops, transcendentals=0, bytes_accessed=bytes_accessed),
    )(x3, w1, b1, w2, b2)

    return out.reshape(N, C, D, H, W)          # free reshape, no transpose


def make_raw_params(key, dim, hid_dim):
    """Synthetic parameters matching FFN's module shapes (eval-mode BN).

    Conv3d weights are (out, in, 1, 1, 1) in PyTorch; stored here as (out, in).
    """
    ks = jax.random.split(key, 10)
    w1 = jax.random.normal(ks[0], (hid_dim, dim), jnp.float32) * 0.1
    g1 = 1.0 + 0.1 * jax.random.normal(ks[1], (hid_dim,), jnp.float32)
    be1 = 0.1 * jax.random.normal(ks[2], (hid_dim,), jnp.float32)
    rm1 = 0.1 * jax.random.normal(ks[3], (hid_dim,), jnp.float32)
    rv1 = jnp.abs(jax.random.normal(ks[4], (hid_dim,), jnp.float32)) + 0.5
    w2 = jax.random.normal(ks[5], (dim, hid_dim), jnp.float32) * 0.1
    # NOTE: module inits bn2.weight = 0; use small nonzero gamma so the test
    # is non-trivial while keeping the exact BN arithmetic.
    g2 = 0.1 * jax.random.normal(ks[6], (dim,), jnp.float32)
    be2 = 0.1 * jax.random.normal(ks[7], (dim,), jnp.float32)
    rm2 = 0.1 * jax.random.normal(ks[8], (dim,), jnp.float32)
    rv2 = jnp.abs(jax.random.normal(ks[9], (dim,), jnp.float32)) + 0.5
    return (w1, g1, be1, rm1, rv1, w2, g2, be2, rm2, rv2)


def fold_params(raw, eps=1e-5):
    """Fold eval-mode BatchNorm into the pointwise-conv weights."""
    w1, g1, be1, rm1, rv1, w2, g2, be2, rm2, rv2 = raw
    s1 = g1 / jnp.sqrt(rv1 + eps)
    s2 = g2 / jnp.sqrt(rv2 + eps)
    w1f = w1 * s1[:, None]                      # (hid, dim)
    b1f = (be1 - rm1 * s1)[:, None]             # (hid, 1)
    w2f = w2 * s2[:, None]                      # (dim, hid)
    b2f = (be2 - rm2 * s2)[:, None]             # (dim, 1)
    return (w1f, b1f, w2f, b2f)


def ffn_reference(x, raw, eps=1e-5):
    """Pure-JAX reference: explicit conv + eval-mode BN (no folding)."""
    w1, g1, be1, rm1, rv1, w2, g2, be2, rm2, rv2 = raw

    def bn(z, g, b, m, v):
        inv = (g / jnp.sqrt(v + eps))[None, :, None, None, None]
        sh = (b - m * g / jnp.sqrt(v + eps))[None, :, None, None, None]
        return z * inv + sh

    h = jnp.einsum("ncdhw,oc->nodhw", x, w1)
    h = jnp.maximum(bn(h, g1, be1, rm1, rv1), 0.0)
    y = jnp.einsum("ncdhw,oc->nodhw", h, w2)
    return bn(y, g2, be2, rm2, rv2)


if __name__ == "__main__":
    key = jax.random.PRNGKey(0)
    k_x, k_p = jax.random.split(key)

    dim = 4
    hid_dim = int(dim * 2)            # FFN default: hid_dim = 2 * dim
    N, D, H, W = 2, 4, 16, 16         # small 3D volume, NCDHW (S = 1024)

    x = jax.random.normal(k_x, (N, dim, D, H, W), jnp.float32)
    raw = make_raw_params(k_p, dim, hid_dim)
    params = fold_params(raw)

    out = ffn_pallas(x, params)       # f32 path (bf16 available via use_bf16)
    out = jax.block_until_ready(out)

    ref = ffn_reference(x, raw)
    assert out.shape == x.shape
    assert jnp.allclose(out, ref, atol=1e-4, rtol=1e-4), "mismatch vs reference"

    print("KERNEL_OK")
</pallas_src>

<mosaic_0001>
module attributes {stable_mosaic.version = 11 : i64} {
  func.func @ffn_kernel(%arg0: i32, %arg1: i32, %arg2: memref<1x4x512xf32, #tpu.memory_space<vmem>>, %arg3: memref<8x4xf32, #tpu.memory_space<vmem>>, %arg4: memref<8x1xf32, #tpu.memory_space<vmem>>, %arg5: memref<4x8xf32, #tpu.memory_space<vmem>>, %arg6: memref<4x1xf32, #tpu.memory_space<vmem>>, %arg7: memref<1x4x512xf32, #tpu.memory_space<vmem>>) attributes {dimension_semantics = [#tpu.dimension_semantics<parallel>, #tpu.dimension_semantics<parallel>], iteration_bounds = array<i64: 2, 2>, scalar_prefetch = 0 : i64, scratch_operands = 0 : i64, tpu.core_type = #tpu.core_type<tc>, window_params = [{transform_indices = @transform_0, window_bounds = array<i64: 1, 4, 512>}, {pipeline_mode = #tpu.pipeline_mode<synchronous>, transform_indices = @transform_1, window_bounds = array<i64: 8, 4>}, {pipeline_mode = #tpu.pipeline_mode<synchronous>, transform_indices = @transform_2, window_bounds = array<i64: 8, 1>}, {pipeline_mode = #tpu.pipeline_mode<synchronous>, transform_indices = @transform_3, window_bounds = array<i64: 4, 8>}, {pipeline_mode = #tpu.pipeline_mode<synchronous>, transform_indices = @transform_4, window_bounds = array<i64: 4, 1>}, {transform_indices = @transform_5, window_bounds = array<i64: 1, 4, 512>}]} {
    %c0 = arith.constant 0 : index
    %c0_0 = arith.constant 0 : index
    %c0_1 = arith.constant 0 : index
    %0 = vector.load %arg2[%c0, %c0_0, %c0_1] : memref<1x4x512xf32, #tpu.memory_space<vmem>>, vector<1x4x512xf32>
    %1 = vector.shape_cast %0 : vector<1x4x512xf32> to vector<4x512xf32>
    %c0_2 = arith.constant 0 : index
    %c0_3 = arith.constant 0 : index
    %2 = vector.load %arg3[%c0_2, %c0_3] : memref<8x4xf32, #tpu.memory_space<vmem>>, vector<8x4xf32>
    %cst = arith.constant dense<0.000000e+00> : vector<8x512xf32>
    %3 = tpu.matmul %2, %1, %cst {dimension_numbers = #tpu.dot_dimension_numbers<[1], [0], [0], [1], [0, 0, 1, 1], [], []>} : vector<8x4xf32>, vector<4x512xf32>, vector<8x512xf32> -> vector<8x512xf32>
    %c0_4 = arith.constant 0 : index
    %c0_5 = arith.constant 0 : index
    %4 = vector.load %arg4[%c0_4, %c0_5] : memref<8x1xf32, #tpu.memory_space<vmem>>, vector<8x1xf32>
    %5 = vector.broadcast %4 : vector<8x1xf32> to vector<8x512xf32>
    %6 = arith.addf %3, %5 : vector<8x512xf32>
    %cst_6 = arith.constant 0.000000e+00 : f32
    %7 = vector.broadcast %cst_6 : f32 to vector<8x512xf32>
    %8 = arith.maximumf %6, %7 : vector<8x512xf32>
    %c0_7 = arith.constant 0 : index
    %c0_8 = arith.constant 0 : index
    %9 = vector.load %arg5[%c0_7, %c0_8] : memref<4x8xf32, #tpu.memory_space<vmem>>, vector<4x8xf32>
    %cst_9 = arith.constant dense<0.000000e+00> : vector<4x512xf32>
    %10 = tpu.matmul %9, %8, %cst_9 {dimension_numbers = #tpu.dot_dimension_numbers<[1], [0], [0], [1], [0, 0, 1, 1], [], []>} : vector<4x8xf32>, vector<8x512xf32>, vector<4x512xf32> -> vector<4x512xf32>
    %c0_10 = arith.constant 0 : index
    %c0_11 = arith.constant 0 : index
    %11 = vector.load %arg6[%c0_10, %c0_11] : memref<4x1xf32, #tpu.memory_space<vmem>>, vector<4x1xf32>
    %12 = vector.broadcast %11 : vector<4x1xf32> to vector<4x512xf32>
    %13 = arith.addf %10, %12 : vector<4x512xf32>
    %c0_12 = arith.constant 0 : index
    %c0_13 = arith.constant 0 : index
    %c0_14 = arith.constant 0 : index
    %14 = vector.load %arg7[%c0_12, %c0_13, %c0_14] : memref<1x4x512xf32, #tpu.memory_space<vmem>>, vector<1x4x512xf32>
    %15 = vector.shape_cast %14 : vector<1x4x512xf32> to vector<4x512xf32>
    %16 = vector.shape_cast %13 : vector<4x512xf32> to vector<1x4x512xf32>
    tpu.vector_store %arg7[%c0_12, %c0_13, %c0_14], %16 {strides = array<i32>} : memref<1x4x512xf32, #tpu.memory_space<vmem>>, vector<1x4x512xf32>,
    return
  }
  func.func @transform_0(%arg0: i32, %arg1: i32) -> (i32, i32, i32) {
    %c0_i32 = arith.constant 0 : i32
    %c0_i32_0 = arith.constant 0 : i32
    return %arg0, %c0_i32, %arg1 : i32, i32, i32
  }
  func.func @transform_1(%arg0: i32, %arg1: i32) -> (i32, i32) {
    %c0_i32 = arith.constant 0 : i32
    %c0_i32_0 = arith.constant 0 : i32
    %c0_i32_1 = arith.constant 0 : i32
    return %c0_i32, %c0_i32_0 : i32, i32
  }
  func.func @transform_2(%arg0: i32, %arg1: i32) -> (i32, i32) {
    %c0_i32 = arith.constant 0 : i32
    %c0_i32_0 = arith.constant 0 : i32
    %c0_i32_1 = arith.constant 0 : i32
    return %c0_i32, %c0_i32_0 : i32, i32
  }
  func.func @transform_3(%arg0: i32, %arg1: i32) -> (i32, i32) {
    %c0_i32 = arith.constant 0 : i32
    %c0_i32_0 = arith.constant 0 : i32
    %c0_i32_1 = arith.constant 0 : i32
    return %c0_i32, %c0_i32_0 : i32, i32
  }
  func.func @transform_4(%arg0: i32, %arg1: i32) -> (i32, i32) {
    %c0_i32 = arith.constant 0 : i32
    %c0_i32_0 = arith.constant 0 : i32
    %c0_i32_1 = arith.constant 0 : i32
    return %c0_i32, %c0_i32_0 : i32, i32
  }
  func.func @transform_5(%arg0: i32, %arg1: i32) -> (i32, i32, i32) {
    %c0_i32 = arith.constant 0 : i32
    %c0_i32_0 = arith.constant 0 : i32
    return %arg0, %c0_i32, %arg1 : i32, i32, i32
  }
}

</mosaic_0001>

<llo_original>
// kernel: ffn_pallas.1
$region0: #{ffn_pallas.1}
  #allocation0 [shape = 'u32[]', space=smem, size = 0x4, offset = 0x4, fixed_abs, tag = 'smem constant byte address 0x4 - core index']
  #allocation1 [shape = 'u32[144,128]{1,0:T(1,128)}', space=vmem, size = 0x12000, scoped, tag = 'internal scratch']
  %s0 = inlined_call_operand.vmem [shape: f32[2,4,1024], index: 0, kind: input, shape index: {}]
  %s1 = inlined_call_operand.vmem [shape: f32[8,4], index: 1, kind: input, shape index: {}]
  %s2 = inlined_call_operand.vmem [shape: f32[8,1], index: 2, kind: input, shape index: {}]
  %s3 = inlined_call_operand.vmem [shape: f32[4,8], index: 3, kind: input, shape index: {}]
  %s4 = inlined_call_operand.vmem [shape: f32[4,1], index: 4, kind: input, shape index: {}]
  %s5 = inlined_call_operand.vmem [shape: f32[2,4,1024], index: 5, kind: output, shape index: {}]
  %s6 = sld [smem:[#allocation0]]
  $region53: #{ffn_pallas.1} parent=0
    _
  %s8 = ssub.s32 1, %s6
  %s9 = scalar_select 0, %s8, %s6
  loop: start=0, step=1, limit=6
  $region2: #{ffn_pallas.1} parent=0 // loop_pre_header
    _
  $region3: #{ffn_pallas.1} parent=0 // loop_header
    %s11 = sphi 0, %s15
    %p12 = scmp.ge.s32.totalorder %s11, 6
    %s18 = sphi 0, %s30
    %s19 = sphi 0, %s26
    %s20 = sphi 0, %s18
    %s21 = sphi 0, %s19
    %s22 = sphi 0, %s20
    %s23 = sphi 0, %s21
    %s35 = sphi 0, %s37
    %s38 = sphi 0, %s35
    %s39 = sphi 0, %s38
    %s55 = sphi 0, %s39
    %s59 = sphi 0, %s59
    %s61 = sphi 0, %s59
    %s62 = sphi 0, %s61
    %s76 = sphi 0, %s62
    %s80 = sphi 0, %s80
    %s82 = sphi 0, %s80
    %s83 = sphi 0, %s82
    %s97 = sphi 0, %s83
    %s101 = sphi 0, %s101
    %s103 = sphi 0, %s101
    %s104 = sphi 0, %s103
    %s118 = sphi 0, %s104
    %s122 = sphi 0, %s122
    %s124 = sphi 0, %s122
    %s125 = sphi 0, %s124
    %s139 = sphi 0, %s125
    %s147 = sphi 0, %s149
    %s150 = sphi 0, %s147
    %s151 = sphi 0, %s150
    %s167 = sphi 0, %s151
  $region4: #{ffn_pallas.1} parent=0 // loop_header_branch
    %14 = sbr.rel (%p12) target = $region8
  $region5: #{ffn_pallas.1} parent=0 // loop_body
    %s16 = ssub.s32 %s11, 1
    %s17 = ssub.s32 %s11, 2
    %s24 = sadd.s32 1, %s19
    %p25 = scmp.ge.s32.totalorder %s24, 2
    %s26 = scalar_select %p25, 0, %s24
    %s27 = sadd.s32 1, %s18
    %s28 = scalar_select %p25, %s27, %s18
    %p29 = scmp.ge.s32.totalorder %s28, 2
    %s30 = scalar_select %p29, 0, %s28
    %s31 = ssub.s32 %s18, %s30
    %s32 = ssub.s32 %s19, %s26
    %s33 = sor.u32 %s31, %s32
    %p34 = scmp.eq.s32.totalorder %s33, 0
    %s36 = sadd.s32 %s35, 1
    %s37 = scalar_select %p34, %s35, %s36
    %p40 = pneg %p34
    %p41 = scmp.eq.s32.totalorder %s11, 3
    %p42 = por %p40, %p41
    %p43 = scmp.ne.s32.totalorder %s35, %s38
    %p44 = scmp.eq.s32.totalorder %s11, 0
    %p45 = por %p43, %p44
    %p46 = scmp.ne.s32.totalorder %s35, %s38
    %p47 = scmp.eq.s32.totalorder %s16, 3
    %p48 = por %p46, %p47
    %p49 = scmp.ne.s32.totalorder %s38, %s39
    %p50 = scmp.eq.s32.totalorder %s16, 0
    %p51 = por %p49, %p50
    %p52 = scmp.ne.s32.totalorder %s38, %s39
    %p53 = scmp.eq.s32.totalorder %s17, 3
    %p54 = por %p52, %p53
    %p56 = scmp.ne.s32.totalorder %s39, %s55
    %p57 = scmp.eq.s32.totalorder %s17, 0
    %p58 = por %p56, %p57
    %s60 = sadd.s32 %s59, 1
    %p63 = scmp.eq.s32.totalorder %s11, 3
    %p64 = scmp.ne.s32.totalorder %s59, %s61
    %p65 = scmp.eq.s32.totalorder %s11, 0
    %p66 = por %p64, %p65
    %p67 = scmp.ne.s32.totalorder %s59, %s61
    %p68 = scmp.eq.s32.totalorder %s16, 3
    %p69 = por %p67, %p68
    %p70 = scmp.ne.s32.totalorder %s61, %s62
    %p71 = scmp.eq.s32.totalorder %s16, 0
    %p72 = por %p70, %p71
    %p73 = scmp.ne.s32.totalorder %s61, %s62
    %p74 = scmp.eq.s32.totalorder %s17, 3
    %p75 = por %p73, %p74
    %p77 = scmp.ne.s32.totalorder %s62, %s76
    %p78 = scmp.eq.s32.totalorder %s17, 0
    %p79 = por %p77, %p78
    %s81 = sadd.s32 %s80, 1
    %p84 = scmp.eq.s32.totalorder %s11, 3
    %p85 = scmp.ne.s32.totalorder %s80, %s82
    %p86 = scmp.eq.s32.totalorder %s11, 0
    %p87 = por %p85, %p86
    %p88 = scmp.ne.s32.totalorder %s80, %s82
    %p89 = scmp.eq.s32.totalorder %s16, 3
    %p90 = por %p88, %p89
    %p91 = scmp.ne.s32.totalorder %s82, %s83
    %p92 = scmp.eq.s32.totalorder %s16, 0
    %p93 = por %p91, %p92
    %p94 = scmp.ne.s32.totalorder %s82, %s83
    %p95 = scmp.eq.s32.totalorder %s17, 3
    %p96 = por %p94, %p95
    %p98 = scmp.ne.s32.totalorder %s83, %s97
    %p99 = scmp.eq.s32.totalorder %s17, 0
    %p100 = por %p98, %p99
    %s102 = sadd.s32 %s101, 1
    %p105 = scmp.eq.s32.totalorder %s11, 3
    %p106 = scmp.ne.s32.totalorder %s101, %s103
    %p107 = scmp.eq.s32.totalorder %s11, 0
    %p108 = por %p106, %p107
    %p109 = scmp.ne.s32.totalorder %s101, %s103
    %p110 = scmp.eq.s32.totalorder %s16, 3
    %p111 = por %p109, %p110
    %p112 = scmp.ne.s32.totalorder %s103, %s104
    %p113 = scmp.eq.s32.totalorder %s16, 0
    %p114 = por %p112, %p113
    %p115 = scmp.ne.s32.totalorder %s103, %s104
    %p116 = scmp.eq.s32.totalorder %s17, 3
    %p117 = por %p115, %p116
    %p119 = scmp.ne.s32.totalorder %s104, %s118
    %p120 = scmp.eq.s32.totalorder %s17, 0
    %p121 = por %p119, %p120
    %s123 = sadd.s32 %s122, 1
    %p126 = scmp.eq.s32.totalorder %s11, 3
    %p127 = scmp.ne.s32.totalorder %s122, %s124
    %p128 = scmp.eq.s32.totalorder %s11, 0
    %p129 = por %p127, %p128
    %p130 = scmp.ne.s32.totalorder %s122, %s124
    %p131 = scmp.eq.s32.totalorder %s16, 3
    %p132 = por %p130, %p131
    %p133 = scmp.ne.s32.totalorder %s124, %s125
    %p134 = scmp.eq.s32.totalorder %s16, 0
    %p135 = por %p133, %p134
    %p136 = scmp.ne.s32.totalorder %s124, %s125
    %p137 = scmp.eq.s32.totalorder %s17, 3
    %p138 = por %p136, %p137
    %p140 = scmp.ne.s32.totalorder %s125, %s139
    %p141 = scmp.eq.s32.totalorder %s17, 0
    %p142 = por %p140, %p141
    %s143 = ssub.s32 %s18, %s30
    %s144 = ssub.s32 %s19, %s26
    %s145 = sor.u32 %s143, %s144
    %p146 = scmp.eq.s32.totalorder %s145, 0
    %s148 = sadd.s32 %s147, 1
    %s149 = scalar_select %p146, %s147, %s148
    %p152 = pneg %p146
    %p153 = scmp.eq.s32.totalorder %s11, 3
    %p154 = por %p152, %p153
    %p155 = scmp.ne.s32.totalorder %s147, %s150
    %p156 = scmp.eq.s32.totalorder %s11, 0
    %p157 = por %p155, %p156
    %p158 = scmp.ne.s32.totalorder %s147, %s150
    %p159 = scmp.eq.s32.totalorder %s16, 3
    %p160 = por %p158, %p159
    %p161 = scmp.ne.s32.totalorder %s150, %s151
    %p162 = scmp.eq.s32.totalorder %s16, 0
    %p163 = por %p161, %p162
    %p164 = scmp.ne.s32.totalorder %s150, %s151
    %p165 = scmp.eq.s32.totalorder %s17, 3
    %p166 = por %p164, %p165
    %p168 = scmp.ne.s32.totalorder %s151, %s167
    %p169 = scmp.eq.s32.totalorder %s17, 0
    %p170 = por %p168, %p169
    %p171 = scmp.le.s32.totalorder 1, %s11
    %p172 = scmp.lt.s32.totalorder %s11, 5
    %p173 = pnand %p171, %p172
    %p174 = pneg %p173
    // Predicated region
    $region9: #{ffn_pallas.1} parent=5 // pred_check
      _
    $region10: #{ffn_pallas.1} parent=5 // pred_check_branch
      %176 = sbr.rel (%p173) target = $region12
    $region11: #{ffn_pallas.1} parent=5 // pred_region
      %s177 = ssub.s32 %s11, 1
      // Predicated region
      $region13: #{ffn_pallas.1} parent=11 // pred_check
        %p178 = pneg %p72
      $region14: #{ffn_pallas.1} parent=11 // pred_check_branch
        %180 = sbr.rel (%p178) target = $region16
      $region15: #{ffn_pallas.1} parent=11 // pred_region
        _
      $region16: #{ffn_pallas.1} parent=11 // pred_fallthru
        _
      // Predicated region
      $region17: #{ffn_pallas.1} parent=11 // pred_check
        %p181 = pneg %p93
      $region18: #{ffn_pallas.1} parent=11 // pred_check_branch
        %183 = sbr.rel (%p181) target = $region20
      $region19: #{ffn_pallas.1} parent=11 // pred_region
        _
      $region20: #{ffn_pallas.1} parent=11 // pred_fallthru
        _
      // Predicated region
      $region21: #{ffn_pallas.1} parent=11 // pred_check
        %p184 = pneg %p114
      $region22: #{ffn_pallas.1} parent=11 // pred_check_branch
        %186 = sbr.rel (%p184) target = $region24
      $region23: #{ffn_pallas.1} parent=11 // pred_region
        _
      $region24: #{ffn_pallas.1} parent=11 // pred_fallthru
        _
      // Predicated region
      $region25: #{ffn_pallas.1} parent=11 // pred_check
        %p187 = pneg %p135
      $region26: #{ffn_pallas.1} parent=11 // pred_check_branch
        %189 = sbr.rel (%p187) target = $region28
      $region27: #{ffn_pallas.1} parent=11 // pred_region
        _
      $region28: #{ffn_pallas.1} parent=11 // pred_fallthru
        _
    $region12: #{ffn_pallas.1} parent=5 // pred_fallthru
      _
    %p190 = scmp.lt.s32.totalorder %s11, 4
    // Predicated region
    $region29: #{ffn_pallas.1} parent=5 // pred_check
      %p191 = pneg %p190
    $region30: #{ffn_pallas.1} parent=5 // pred_check_branch
      %193 = sbr.rel (%p191) target = $region32
    $region31: #{ffn_pallas.1} parent=5 // pred_region
      // Predicated region
      $region33: #{ffn_pallas.1} parent=31 // pred_check
        %p194 = pneg %p45
      $region34: #{ffn_pallas.1} parent=31 // pred_check_branch
        %196 = sbr.rel (%p194) target = $region36
      $region35: #{ffn_pallas.1} parent=31 // pred_region
        %s197 = smul.u32 4, %s19
        %p198 = scmp.lt.s32.totalorder %s18, 1
        %s199 = scalar_select %p198, %s18, 1
        %p200 = scmp.lt.s32.totalorder %s197, 7
        %s201 = scalar_select %p200, %s197, 7
        %s202 = smul.addr %s199, 8
        %s203 = sadd.s32 %s201, %s202
        %s204 = smul.addr %s203, 4
        %s205 = scalar_lea.vmem %s0, %s204
        %s206 = smul.u32 4, %s19
      $region36: #{ffn_pallas.1} parent=31 // pred_fallthru
        _
    $region32: #{ffn_pallas.1} parent=5 // pred_fallthru
      _
    %p207 = scmp.le.s32.totalorder 1, %s11
    %p208 = scmp.lt.s32.totalorder %s11, 5
    %p209 = pnand %p207, %p208
    %p210 = pneg %p209
    // Predicated region
    $region37: #{ffn_pallas.1} parent=5 // pred_check
      _
    $region38: #{ffn_pallas.1} parent=5 // pred_check_branch
      %212 = sbr.rel (%p209) target = $region40
    $region39: #{ffn_pallas.1} parent=5 // pred_region
      %s213 = ssub.s32 %s11, 1
      %s214 = smul.u32 4, %s21
      %p215 = scmp.lt.s32.totalorder %s20, 1
      %s216 = scalar_select %p215, %s20, 1
      %p217 = scmp.lt.s32.totalorder %s214, 7
      %s218 = scalar_select %p217, %s214, 7
      %s219 = smul.addr %s216, 8
      %s220 = sadd.s32 %s218, %s219
      %s221 = smul.addr %s220, 4
      %s222 = scalar_lea.vmem %s0, %s221
      %p223 = pneg %p51
      %p224 = pneg %p48
      %p225 = pneg %p72
      %p226 = pneg %p69
      %p227 = pneg %p93
      %p228 = pneg %p90
      %p229 = pneg %p114
      %p230 = pneg %p111
      %p231 = pneg %p135
      %p232 = pneg %p132
      %p233 = pneg %p163
      %p234 = pneg %p160
      %s235 = smul.u32 4, %s21
      %p236 = scmp.lt.s32.totalorder %s20, 1
      %s237 = scalar_select %p236, %s20, 1
      %p238 = scmp.lt.s32.totalorder %s235, 7
      %s239 = scalar_select %p238, %s235, 7
      %s240 = smul.addr %s237, 8
      %s241 = sadd.s32 %s239, %s240
      %s242 = smul.addr %s241, 4
      %s243 = scalar_lea.vmem %s5, %s242
      %s244 = smul.u32 4, %s21
      %p245 = scmp.lt.s32.totalorder %s20, 1
      %s246 = scalar_select %p245, %s20, 1
      %p247 = scmp.lt.s32.totalorder %s244, 7
      %s248 = scalar_select %p247, %s244, 7
      %s249 = smul.addr %s246, 8
      %s250 = sadd.s32 %s248, %s249
      %s251 = smul.addr %s250, 4
      %s252 = scalar_lea.vmem %s0, %s251
      %s253 = smul.u32 4, %s21
      %s254 = smul.u32 4, %s21
      %p255 = scmp.lt.s32.totalorder %s20, 1
      %s256 = scalar_select %p255, %s20, 1
      %p257 = scmp.lt.s32.totalorder %s254, 7
      %s258 = scalar_select %p257, %s254, 7
      %s259 = smul.addr %s256, 8
      %s260 = sadd.s32 %s258, %s259
      %s261 = smul.addr %s260, 4
      %s262 = scalar_lea.vmem %s5, %s261
      %s263 = smul.u32 4, %s21
      %v264 = vld [vmem:[%s252] sm:$0xff]
      %v265 = vld [vmem:[%s252 + $0x8] sm:$0xff]
      %v266 = vld [vmem:[%s1] sm:$0xff]
      %v267 = vld [vmem:[%s2] sm:$0xff]
      %269 = vset.pattern.permute.xlu0 0
      %270 = vperm.xlu0 %269, %v267
      %v271 = vpop.permute.xlu0 %270
      %v275 = vcombine.high %v264, %v264
      %v276 = vcombine.high %v265, %v265
      %vm277 = vcmask 31744
      %v279 = vsel %vm277, %v266, 0
      %vm281 = vcmask 1043456
      %v282 = vsel %vm281, %v264, 0
      %v284 = vsel %vm281, %v275, 0
      %v286 = vsel %vm281, %v265, 0
      %v288 = vsel %vm281, %v276, 0
      %290 = vmatprep.subr.mxu0 %v284
      %291 = vmatpush1.msra.mxu0 %v282
      %292 = vmatprep.subr.mxu0 0.0
      %293 = vmatpush1.msra.mxu0 0.0
      %294 = vmatprep.subr.mxu0 0.0
      %295 = vmatpush1.msra.mxu0 0.0
      %296 = vmatprep.subr.mxu0 0.0
      %297 = vmatpush1.msra.mxu0 0.0
      %298 = vmatprep.subr.mxu0 0.0
      %299 = vmatpush1.msra.mxu0 0.0
      %300 = vmatprep.subr.mxu0 0.0
      %301 = vmatpush1.msra.mxu0 0.0
      %302 = vmatprep.subr.mxu0 0.0
      %303 = vmatpush1.msra.mxu0 0.0
      %304 = vmatprep.subr.mxu0 0.0
      %305 = vmatpush1.msra.mxu0 0.0
      %306 = vmatprep.subr.mxu0 0.0
      %307 = vmatpush1.msra.mxu0 0.0
      %308 = vmatprep.subr.mxu0 0.0
      %309 = vmatpush1.msra.mxu0 0.0
      %310 = vmatprep.subr.mxu0 0.0
      %311 = vmatpush1.msra.mxu0 0.0
      %312 = vmatprep.subr.mxu0 0.0
      %313 = vmatpush1.msra.mxu0 0.0
      %314 = vmatprep.subr.mxu0 0.0
      %315 = vmatpush1.msra.mxu0 0.0
      %316 = vmatprep.subr.mxu0 0.0
      %317 = vmatpush1.msra.mxu0 0.0
      %318 = vmatprep.subr.mxu0 0.0
      %319 = vmatpush1.msra.mxu0 0.0
      %320 = vmatprep.subr.mxu0 0.0
      %321 = vmatpush1.msra.mxu0 0.0
      %322 = vmatprep.subr.mxu0 0.0
      %323 = vmatpush1.msra.mxu0 0.0
      %324 = vmatprep.subr.mxu0 0.0
      %325 = vmatpush1.msra.mxu0 0.0
      %326 = vmatprep.subr.mxu0 0.0
      %327 = vmatpush1.msra.mxu0 0.0
      %328 = vmatprep.subr.mxu0 0.0
      %329 = vmatpush1.msra.mxu0 0.0
      %330 = vmatprep.subr.mxu0 0.0
      %331 = vmatpush1.msra.mxu0 0.0
      %332 = vmatprep.subr.mxu0 0.0
      %333 = vmatpush1.msra.mxu0 0.0
      %334 = vmatprep.subr.mxu0 0.0
      %335 = vmatpush1.msra.mxu0 0.0
      %336 = vmatprep.subr.mxu0 0.0
      %337 = vmatpush1.msra.mxu0 0.0
      %338 = vmatprep.subr.mxu0 0.0
      %339 = vmatpush1.msra.mxu0 0.0
      %340 = vmatprep.subr.mxu0 0.0
      %341 = vmatpush1.msra.mxu0 0.0
      %342 = vmatprep.subr.mxu0 0.0
      %343 = vmatpush1.msra.mxu0 0.0
      %344 = vmatprep.subr.mxu0 0.0
      %345 = vmatpush1.msra.mxu0 0.0
      %346 = vmatprep.subr.mxu0 0.0
      %347 = vmatpush1.msra.mxu0 0.0
      %348 = vmatprep.subr.mxu0 0.0
      %349 = vmatpush1.msra.mxu0 0.0
      %350 = vmatprep.subr.mxu0 0.0
      %351 = vmatpush1.msra.mxu0 0.0
      %352 = vmatprep.subr.mxu0 0.0
      %353 = vmatpush1.msra.mxu0 0.0
      %354 = vmatprep.mubr.f32.mxu0 0.0
      %355 = vmatmul.mubr.f32.gmra.mrb[0].mxu0 %v279
      %v356 = vpop.f32.mrb[0].mxu0
      %v357 = vadd.f32 %v271, %v356
      %v358 = vpop.f32.mrb[0].mxu0
      %v359 = vadd.f32 %v271, %v358
      %360 = vdwg.mxu0
      %361 = vmatprep.subr.mxu0 %v288
      %362 = vmatpush1.msra.mxu0 %v286
      %363 = vmatprep.subr.mxu0 0.0
      %364 = vmatpush1.msra.mxu0 0.0
      %365 = vmatprep.subr.mxu0 0.0
      %366 = vmatpush1.msra.mxu0 0.0
      %367 = vmatprep.subr.mxu0 0.0
      %368 = vmatpush1.msra.mxu0 0.0
      %369 = vmatprep.subr.mxu0 0.0
      %370 = vmatpush1.msra.mxu0 0.0
      %371 = vmatprep.subr.mxu0 0.0
      %372 = vmatpush1.msra.mxu0 0.0
      %373 = vmatprep.subr.mxu0 0.0
      %374 = vmatpush1.msra.mxu0 0.0
      %375 = vmatprep.subr.mxu0 0.0
      %376 = vmatpush1.msra.mxu0 0.0
      %377 = vmatprep.subr.mxu0 0.0
      %378 = vmatpush1.msra.mxu0 0.0
      %379 = vmatprep.subr.mxu0 0.0
      %380 = vmatpush1.msra.mxu0 0.0
      %381 = vmatprep.subr.mxu0 0.0
      %382 = vmatpush1.msra.mxu0 0.0
      %383 = vmatprep.subr.mxu0 0.0
      %384 = vmatpush1.msra.mxu0 0.0
      %385 = vmatprep.subr.mxu0 0.0
      %386 = vmatpush1.msra.mxu0 0.0
      %387 = vmatprep.subr.mxu0 0.0
      %388 = vmatpush1.msra.mxu0 0.0
      %389 = vmatprep.subr.mxu0 0.0
      %390 = vmatpush1.msra.mxu0 0.0
      %391 = vmatprep.subr.mxu0 0.0
      %392 = vmatpush1.msra.mxu0 0.0
      %393 = vmatprep.subr.mxu0 0.0
      %394 = vmatpush1.msra.mxu0 0.0
      %395 = vmatprep.subr.mxu0 0.0
      %396 = vmatpush1.msra.mxu0 0.0
      %397 = vmatprep.subr.mxu0 0.0
      %398 = vmatpush1.msra.mxu0 0.0
      %399 = vmatprep.subr.mxu0 0.0
      %400 = vmatpush1.msra.mxu0 0.0
      %401 = vmatprep.subr.mxu0 0.0
      %402 = vmatpush1.msra.mxu0 0.0
      %403 = vmatprep.subr.mxu0 0.0
      %404 = vmatpush1.msra.mxu0 0.0
      %405 = vmatprep.subr.mxu0 0.0
      %406 = vmatpush1.msra.mxu0 0.0
      %407 = vmatprep.subr.mxu0 0.0
      %408 = vmatpush1.msra.mxu0 0.0
      %409 = vmatprep.subr.mxu0 0.0
      %410 = vmatpush1.msra.mxu0 0.0
      %411 = vmatprep.subr.mxu0 0.0
      %412 = vmatpush1.msra.mxu0 0.0
      %413 = vmatprep.subr.mxu0 0.0
      %414 = vmatpush1.msra.mxu0 0.0
      %415 = vmatprep.subr.mxu0 0.0
      %416 = vmatpush1.msra.mxu0 0.0
      %417 = vmatprep.subr.mxu0 0.0
      %418 = vmatpush1.msra.mxu0 0.0
      %419 = vmatprep.subr.mxu0 0.0
      %420 = vmatpush1.msra.mxu0 0.0
      %421 = vmatprep.subr.mxu0 0.0
      %422 = vmatpush1.msra.mxu0 0.0
      %423 = vmatprep.subr.mxu0 0.0
      %424 = vmatpush1.msra.mxu0 0.0
      %425 = vmatprep.mubr.f32.mxu0 0.0
      %426 = vmatmul.mubr.f32.gmra.mrb[0].mxu0 %v279
      %v427 = vpop.f32.mrb[0].mxu0
      %v428 = vadd.f32 %v271, %v427
      %v429 = vpop.f32.mrb[0].mxu0
      %v430 = vadd.f32 %v271, %v429
      %431 = vdwg.mxu0
      %v432 = vmax.f32 %v357, 0.0
      %v433 = vmax.f32 %v359, 0.0
      %v434 = vmax.f32 %v428, 0.0
      %v435 = vmax.f32 %v430, 0.0
      %v436 = vld [vmem:[%s3] sm:$0xf]
      %v437 = vld [vmem:[%s4] sm:$0xf]
      %439 = vset.pattern.permute.xlu0 0
      %440 = vperm.xlu0 %439, %v437
      %v441 = vpop.permute.xlu0 %440
      %vm443 = vcmask 64512
      %v445 = vsel %vm443, %v436, 0
      %447 = vmatprep.subr.mxu0 %v433
      %448 = vmatpush1.msra.mxu0 %v432
      %449 = vmatprep.subr.mxu0 0.0
      %450 = vmatpush1.msra.mxu0 0.0
      %451 = vmatprep.subr.mxu0 0.0
      %452 = vmatpush1.msra.mxu0 0.0
      %453 = vmatprep.subr.mxu0 0.0
      %454 = vmatpush1.msra.mxu0 0.0
      %455 = vmatprep.subr.mxu0 0.0
      %456 = vmatpush1.msra.mxu0 0.0
      %457 = vmatprep.subr.mxu0 0.0
      %458 = vmatpush1.msra.mxu0 0.0
      %459 = vmatprep.subr.mxu0 0.0
      %460 = vmatpush1.msra.mxu0 0.0
      %461 = vmatprep.subr.mxu0 0.0
      %462 = vmatpush1.msra.mxu0 0.0
      %463 = vmatprep.subr.mxu0 0.0
      %464 = vmatpush1.msra.mxu0 0.0
      %465 = vmatprep.subr.mxu0 0.0
      %466 = vmatpush1.msra.mxu0 0.0
      %467 = vmatprep.subr.mxu0 0.0
      %468 = vmatpush1.msra.mxu0 0.0
      %469 = vmatprep.subr.mxu0 0.0
      %470 = vmatpush1.msra.mxu0 0.0
      %471 = vmatprep.subr.mxu0 0.0
      %472 = vmatpush1.msra.mxu0 0.0
      %473 = vmatprep.subr.mxu0 0.0
      %474 = vmatpush1.msra.mxu0 0.0
      %475 = vmatprep.subr.mxu0 0.0
      %476 = vmatpush1.msra.mxu0 0.0
      %477 = vmatprep.subr.mxu0 0.0
      %478 = vmatpush1.msra.mxu0 0.0
      %479 = vmatprep.subr.mxu0 0.0
      %480 = vmatpush1.msra.mxu0 0.0
      %481 = vmatprep.subr.mxu0 0.0
      %482 = vmatpush1.msra.mxu0 0.0
      %483 = vmatprep.subr.mxu0 0.0
      %484 = vmatpush1.msra.mxu0 0.0
      %485 = vmatprep.subr.mxu0 0.0
      %486 = vmatpush1.msra.mxu0 0.0
      %487 = vmatprep.subr.mxu0 0.0
      %488 = vmatpush1.msra.mxu0 0.0
      %489 = vmatprep.subr.mxu0 0.0
      %490 = vmatpush1.msra.mxu0 0.0
      %491 = vmatprep.subr.mxu0 0.0
      %492 = vmatpush1.msra.mxu0 0.0
      %493 = vmatprep.subr.mxu0 0.0
      %494 = vmatpush1.msra.mxu0 0.0
      %495 = vmatprep.subr.mxu0 0.0
      %496 = vmatpush1.msra.mxu0 0.0
      %497 = vmatprep.subr.mxu0 0.0
      %498 = vmatpush1.msra.mxu0 0.0
      %499 = vmatprep.subr.mxu0 0.0
      %500 = vmatpush1.msra.mxu0 0.0
      %501 = vmatprep.subr.mxu0 0.0
      %502 = vmatpush1.msra.mxu0 0.0
      %503 = vmatprep.subr.mxu0 0.0
      %504 = vmatpush1.msra.mxu0 0.0
      %505 = vmatprep.subr.mxu0 0.0
      %506 = vmatpush1.msra.mxu0 0.0
      %507 = vmatprep.subr.mxu0 0.0
      %508 = vmatpush1.msra.mxu0 0.0
      %509 = vmatprep.subr.mxu0 0.0
      %510 = vmatpush1.msra.mxu0 0.0
      %511 = vmatprep.mubr.f32.mxu0 0.0
      %512 = vmatmul.mubr.f32.gmra.mrb[0].mxu0 %v445
      %v513 = vpop.f32.mrb[0].mxu0
      %v514 = vadd.f32 %v441, %v513
      %v515 = vpop.f32.mrb[0].mxu0
      %v516 = vadd.f32 %v441, %v515
      %517 = vdwg.mxu0
      %518 = vmatprep.subr.mxu0 %v435
      %519 = vmatpush1.msra.mxu0 %v434
      %520 = vmatprep.subr.mxu0 0.0
      %521 = vmatpush1.msra.mxu0 0.0
      %522 = vmatprep.subr.mxu0 0.0
      %523 = vmatpush1.msra.mxu0 0.0
      %524 = vmatprep.subr.mxu0 0.0
      %525 = vmatpush1.msra.mxu0 0.0
      %526 = vmatprep.subr.mxu0 0.0
      %527 = vmatpush1.msra.mxu0 0.0
      %528 = vmatprep.subr.mxu0 0.0
      %529 = vmatpush1.msra.mxu0 0.0
      %530 = vmatprep.subr.mxu0 0.0
      %531 = vmatpush1.msra.mxu0 0.0
      %532 = vmatprep.subr.mxu0 0.0
      %533 = vmatpush1.msra.mxu0 0.0
      %534 = vmatprep.subr.mxu0 0.0
      %535 = vmatpush1.msra.mxu0 0.0
      %536 = vmatprep.subr.mxu0 0.0
      %537 = vmatpush1.msra.mxu0 0.0
      %538 = vmatprep.subr.mxu0 0.0
      %539 = vmatpush1.msra.mxu0 0.0
      %540 = vmatprep.subr.mxu0 0.0
      %541 = vmatpush1.msra.mxu0 0.0
      %542 = vmatprep.subr.mxu0 0.0
      %543 = vmatpush1.msra.mxu0 0.0
      %544 = vmatprep.subr.mxu0 0.0
      %545 = vmatpush1.msra.mxu0 0.0
      %546 = vmatprep.subr.mxu0 0.0
      %547 = vmatpush1.msra.mxu0 0.0
      %548 = vmatprep.subr.mxu0 0.0
      %549 = vmatpush1.msra.mxu0 0.0
      %550 = vmatprep.subr.mxu0 0.0
      %551 = vmatpush1.msra.mxu0 0.0
      %552 = vmatprep.subr.mxu0 0.0
      %553 = vmatpush1.msra.mxu0 0.0
      %554 = vmatprep.subr.mxu0 0.0
      %555 = vmatpush1.msra.mxu0 0.0
      %556 = vmatprep.subr.mxu0 0.0
      %557 = vmatpush1.msra.mxu0 0.0
      %558 = vmatprep.subr.mxu0 0.0
      %559 = vmatpush1.msra.mxu0 0.0
      %560 = vmatprep.subr.mxu0 0.0
      %561 = vmatpush1.msra.mxu0 0.0
      %562 = vmatprep.subr.mxu0 0.0
      %563 = vmatpush1.msra.mxu0 0.0
      %564 = vmatprep.subr.mxu0 0.0
      %565 = vmatpush1.msra.mxu0 0.0
      %566 = vmatprep.subr.mxu0 0.0
      %567 = vmatpush1.msra.mxu0 0.0
      %568 = vmatprep.subr.mxu0 0.0
      %569 = vmatpush1.msra.mxu0 0.0
      %570 = vmatprep.subr.mxu0 0.0
      %571 = vmatpush1.msra.mxu0 0.0
      %572 = vmatprep.subr.mxu0 0.0
      %573 = vmatpush1.msra.mxu0 0.0
      %574 = vmatprep.subr.mxu0 0.0
      %575 = vmatpush1.msra.mxu0 0.0
      %576 = vmatprep.subr.mxu0 0.0
      %577 = vmatpush1.msra.mxu0 0.0
      %578 = vmatprep.subr.mxu0 0.0
      %579 = vmatpush1.msra.mxu0 0.0
      %580 = vmatprep.subr.mxu0 0.0
      %581 = vmatpush1.msra.mxu0 0.0
      %582 = vmatprep.mubr.f32.mxu0 0.0
      %583 = vmatmul.mubr.f32.gmra.mrb[0].mxu0 %v445
      %v584 = vpop.f32.mrb[0].mxu0
      %v585 = vadd.f32 %v441, %v584
      %v586 = vpop.f32.mrb[0].mxu0
      %v587 = vadd.f32 %v441, %v586
      %588 = vdwg.mxu0
      %v593 = vcombine.low %v514, %v516
      %v594 = vcombine.low %v585, %v587
      %597 = vst [vmem:[%s262] sm:$0xff] %v593
      %598 = vst [vmem:[%s262 + $0x8] sm:$0xff] %v594
      %s599 = smul.u32 4, %s21
      %p600 = scmp.lt.s32.totalorder %s20, 1
      %s601 = scalar_select %p600, %s20, 1
      %p602 = scmp.lt.s32.totalorder %s599, 7
      %s603 = scalar_select %p602, %s599, 7
      %s604 = smul.addr %s601, 8
      %s605 = sadd.s32 %s603, %s604
      %s606 = smul.addr %s605, 4
      %s607 = scalar_lea.vmem %s5, %s606
      // Predicated region
      $region41: #{ffn_pallas.1} parent=39 // pred_check
        %p608 = pneg %p160
      $region42: #{ffn_pallas.1} parent=39 // pred_check_branch
        %610 = sbr.rel (%p608) target = $region44
      $region43: #{ffn_pallas.1} parent=39 // pred_region
        %s611 = smul.u32 4, %s21
      $region44: #{ffn_pallas.1} parent=39 // pred_fallthru
        _
    $region40: #{ffn_pallas.1} parent=5 // pred_fallthru
      _
    %p612 = scmp.le.s32.totalorder 2, %s11
    // Predicated region
    $region45: #{ffn_pallas.1} parent=5 // pred_check
      %p613 = pneg %p612
    $region46: #{ffn_pallas.1} parent=5 // pred_check_branch
      %615 = sbr.rel (%p613) target = $region48
    $region47: #{ffn_pallas.1} parent=5 // pred_region
      %s616 = ssub.s32 %s11, 2
      // Predicated region
      $region49: #{ffn_pallas.1} parent=47 // pred_check
        %p617 = pneg %p166
      $region50: #{ffn_pallas.1} parent=47 // pred_check_branch
        %619 = sbr.rel (%p617) target = $region52
      $region51: #{ffn_pallas.1} parent=47 // pred_region
        %s620 = smul.u32 4, %s23
        %p621 = scmp.lt.s32.totalorder %s22, 1
        %s622 = scalar_select %p621, %s22, 1
        %p623 = scmp.lt.s32.totalorder %s620, 7
        %s624 = scalar_select %p623, %s620, 7
        %s625 = smul.addr %s622, 8
        %s626 = sadd.s32 %s624, %s625
        %s627 = smul.addr %s626, 4
        %s628 = scalar_lea.vmem %s5, %s627
      $region52: #{ffn_pallas.1} parent=47 // pred_fallthru
        _
    $region48: #{ffn_pallas.1} parent=5 // pred_fallthru
      _
  $region6: #{ffn_pallas.1} parent=0 // loop_footer
    %s15 = sadd.s32 1, %s11
  $region7: #{ffn_pallas.1} parent=0 // loop_footer_branch
    %10 = sbr.rel target = $region3
  $region8: #{ffn_pallas.1} parent=0 // loop_exit
    _

</llo_original>
